<compile_context>
chip_gen: v7x
topology: tpu7x:2x2x1
jax: 0.10.0
libtpu: 0.0.40
codegen_flags: <defaults>
</compile_context>

<pallas_src>
import functools

import numpy as np
import jax
import jax.numpy as jnp
from jax import lax
from jax.experimental import pallas as pl
from jax.experimental.pallas import tpu as pltpu


def _round_up(x, m):
    return ((x + m - 1) // m) * m


def _pick_nb(n, max_nb=8):
    """Largest images-per-step dividing N that still leaves >= 2 grid steps."""
    best = 1
    for nb in range(1, min(n, max_nb) + 1):
        if n % nb == 0 and n // nb >= 2:
            best = nb
    return best


def _conv3x3_relu_cat_kernel(x_ref, w_ref, b_ref, m_ref, o_ref, *,
                             H, W, Cin, Cout, Nb, P):
    """One grid step processes Nb images.

    x_ref: (Nb, Cin, HW)        VMEM  input images, spatial dims flattened on lanes
    w_ref: (Cout, 9*Cin)        VMEM  conv weights, tap-major: (kh*3+kw)*Cin + ci
    b_ref: (Cout, 1)            VMEM  conv bias (f32)
    m_ref: (3, HW)              VMEM  horizontal-boundary masks, one per kw (dw=kw-1)
    o_ref: (Nb, Cout+Cin, HW)   VMEM  cat([relu(conv3x3(x)), x], channel dim)
    """
    HW = H * W
    w2d = w_ref[...]                                       # (Cout, 9*Cin)
    bias = b_ref[...]                                      # (Cout, 1)
    masks = m_ref[...]                                     # (3, HW)

    imgs = [x_ref[n] for n in range(Nb)]                   # each (Cin, HW)

    # Zero halo: P >= W+1 makes every vertically-out-of-range tap read zeros,
    # and P multiple of 128 keeps the concat boundaries vreg-aligned.
    zpad = jnp.zeros((Cin, P), dtype=x_ref.dtype)
    padded = [jnp.concatenate([zpad, img, zpad], axis=1) for img in imgs]

    # im2col slab: 9 shifted/masked tap views stacked on sublanes,
    # Nb images side by side on lanes -> (9*Cin, Nb*HW).
    tap_blocks = []
    for kh in range(3):
        for kw in range(3):
            off = P + (kh - 1) * W + (kw - 1)              # static element offset
            pieces = []
            for n in range(Nb):
                s = padded[n][:, off:off + HW]             # (Cin, HW) static slice
                if kw != 1:                                # left/right column wrap
                    s = s * masks[kw:kw + 1, :]            # (1,HW) bcast over Cin
                pieces.append(s)
            tap_blocks.append(pieces[0] if Nb == 1
                              else jnp.concatenate(pieces, axis=1))
    slab = jnp.concatenate(tap_blocks, axis=0)             # (9*Cin, Nb*HW)

    # Single MXU matmul replaces the Cout*Cin*9 per-row scalar-FMA unroll.
    conv = jnp.dot(w2d, slab, preferred_element_type=jnp.float32)   # (Cout, Nb*HW)
    conv = jnp.maximum(conv + bias, 0.0)

    # In-kernel channel concat: one full lane-dense store per image.
    for n in range(Nb):
        conv_n = conv[:, n * HW:(n + 1) * HW].astype(o_ref.dtype)
        o_ref[n] = jnp.concatenate([conv_n, imgs[n]], axis=0)       # (Cout+Cin, HW)


def cat_sequential(x_nchw, w_oihw, b):
    """y = cat([relu(conv3x3(x, padding=1)), x], dim=1); NCHW in / NCHW out."""
    N, Cin, H, W = x_nchw.shape
    Cout = w_oihw.shape[0]
    HW = H * W
    P = max(128, _round_up(W + 1, 128))
    Nb = _pick_nb(N)
    dtype = x_nchw.dtype

    x_flat = x_nchw.reshape(N, Cin, HW)        # free contiguous collapse (no copy)
    # Tap-major weight layout matching the slab row order: (Cout, 3,3,Cin) -> 2D.
    w2d = jnp.transpose(w_oihw, (0, 2, 3, 1)).reshape(Cout, 9 * Cin).astype(dtype)
    b2d = b.reshape(Cout, 1).astype(jnp.float32)

    # Horizontal-boundary validity masks, passed as a kernel INPUT (not captured
    # constants): masks[kw, h*W + w] == 1 iff 0 <= w + (kw-1) < W.
    w_idx = np.arange(W)
    m_np = np.zeros((3, HW), dtype=np.float32)
    for kw in range(3):
        dw = kw - 1
        m_np[kw] = np.tile(((w_idx + dw >= 0) & (w_idx + dw < W)).astype(np.float32), H)
    masks = jnp.asarray(m_np, dtype=dtype)

    kernel = functools.partial(
        _conv3x3_relu_cat_kernel, H=H, W=W, Cin=Cin, Cout=Cout, Nb=Nb, P=P)

    out = pl.pallas_call(
        kernel,
        out_shape=jax.ShapeDtypeStruct((N, Cout + Cin, HW), dtype),
        grid_spec=pltpu.PrefetchScalarGridSpec(
            num_scalar_prefetch=0,
            grid=(N // Nb,),
            in_specs=[
                pl.BlockSpec((Nb, Cin, HW), lambda n: (n, 0, 0)),      # x
                pl.BlockSpec((Cout, 9 * Cin), lambda n: (0, 0)),       # weights
                pl.BlockSpec((Cout, 1), lambda n: (0, 0)),             # bias
                pl.BlockSpec((3, HW), lambda n: (0, 0)),               # masks
            ],
            out_specs=pl.BlockSpec((Nb, Cout + Cin, HW), lambda n: (n, 0, 0)),
        ),
        compiler_params=pltpu.CompilerParams(
            dimension_semantics=("parallel",)),
    )(x_flat, w2d, b2d, masks)

    return out.reshape(N, Cout + Cin, H, W)


def _reference(x_nchw, w_oihw, b):
    conv = lax.conv_general_dilated(
        x_nchw, w_oihw, window_strides=(1, 1), padding=((1, 1), (1, 1)),
        dimension_numbers=("NCHW", "OIHW", "NCHW"))
    conv = jnp.maximum(conv + b[None, :, None, None], 0.0)
    return jnp.concatenate([conv, x_nchw], axis=1)


if __name__ == "__main__":
    key = jax.random.PRNGKey(0)
    kx, kw, kb = jax.random.split(key, 3)

    N, Cin, H, W = 2, 4, 16, 16
    Cout = 4

    x = jax.random.normal(kx, (N, Cin, H, W), dtype=jnp.float32)
    # Deterministic parameter init (Conv2d(Cin, Cout, 3, padding=1)).
    w = jax.random.normal(kw, (Cout, Cin, 3, 3), dtype=jnp.float32) * 0.1
    b = jax.random.normal(kb, (Cout,), dtype=jnp.float32) * 0.1

    y = cat_sequential(x, w, b)
    y = jax.block_until_ready(y)

    y_ref = _reference(x, w, b)
    assert y.shape == (N, Cout + Cin, H, W), y.shape
    assert jnp.allclose(y, y_ref, atol=1e-4, rtol=1e-4), "mismatch vs reference"

    print("KERNEL_OK")
</pallas_src>

<mosaic_0001>
module attributes {stable_mosaic.version = 11 : i64} {
  func.func @_conv3x3_relu_cat_kernel(%arg0: i32, %arg1: memref<1x4x256xf32, #tpu.memory_space<vmem>>, %arg2: memref<4x36xf32, #tpu.memory_space<vmem>>, %arg3: memref<4x1xf32, #tpu.memory_space<vmem>>, %arg4: memref<3x256xf32, #tpu.memory_space<vmem>>, %arg5: memref<1x8x256xf32, #tpu.memory_space<vmem>>) attributes {dimension_semantics = [#tpu.dimension_semantics<parallel>], iteration_bounds = array<i64: 2>, scalar_prefetch = 0 : i64, scratch_operands = 0 : i64, tpu.core_type = #tpu.core_type<tc>, window_params = [{transform_indices = @transform_0, window_bounds = array<i64: 1, 4, 256>}, {pipeline_mode = #tpu.pipeline_mode<synchronous>, transform_indices = @transform_1, window_bounds = array<i64: 4, 36>}, {pipeline_mode = #tpu.pipeline_mode<synchronous>, transform_indices = @transform_2, window_bounds = array<i64: 4, 1>}, {pipeline_mode = #tpu.pipeline_mode<synchronous>, transform_indices = @transform_3, window_bounds = array<i64: 3, 256>}, {transform_indices = @transform_4, window_bounds = array<i64: 1, 8, 256>}]} {
    %c0 = arith.constant 0 : index
    %c0_0 = arith.constant 0 : index
    %0 = vector.load %arg2[%c0, %c0_0] : memref<4x36xf32, #tpu.memory_space<vmem>>, vector<4x36xf32>
    %c0_1 = arith.constant 0 : index
    %c0_2 = arith.constant 0 : index
    %1 = vector.load %arg3[%c0_1, %c0_2] : memref<4x1xf32, #tpu.memory_space<vmem>>, vector<4x1xf32>
    %c0_3 = arith.constant 0 : index
    %c0_4 = arith.constant 0 : index
    %2 = vector.load %arg4[%c0_3, %c0_4] : memref<3x256xf32, #tpu.memory_space<vmem>>, vector<3x256xf32>
    %c0_5 = arith.constant 0 : index
    %c0_6 = arith.constant 0 : index
    %c0_7 = arith.constant 0 : index
    %3 = vector.load %arg1[%c0_5, %c0_6, %c0_7] : memref<1x4x256xf32, #tpu.memory_space<vmem>>, vector<1x4x256xf32>
    %4 = vector.shape_cast %3 : vector<1x4x256xf32> to vector<4x256xf32>
    %cst = arith.constant 0.000000e+00 : f32
    %5 = vector.broadcast %cst : f32 to vector<4x128xf32>
    %6 = tpu.concatenate %5, %4, %5 in 1 : vector<4x128xf32>, vector<4x256xf32>, vector<4x128xf32> -> vector<4x512xf32>
    %7 = vector.extract_strided_slice %6 {offsets = [0, 111], sizes = [4, 256], strides = [1, 1]} : vector<4x512xf32> to vector<4x256xf32>
    %8 = vector.extract_strided_slice %2 {offsets = [0, 0], sizes = [1, 256], strides = [1, 1]} : vector<3x256xf32> to vector<1x256xf32>
    %9 = vector.broadcast %8 : vector<1x256xf32> to vector<4x256xf32>
    %10 = arith.mulf %7, %9 : vector<4x256xf32>
    %11 = vector.extract_strided_slice %6 {offsets = [0, 112], sizes = [4, 256], strides = [1, 1]} : vector<4x512xf32> to vector<4x256xf32>
    %12 = vector.extract_strided_slice %6 {offsets = [0, 113], sizes = [4, 256], strides = [1, 1]} : vector<4x512xf32> to vector<4x256xf32>
    %13 = vector.extract_strided_slice %2 {offsets = [2, 0], sizes = [1, 256], strides = [1, 1]} : vector<3x256xf32> to vector<1x256xf32>
    %14 = vector.broadcast %13 : vector<1x256xf32> to vector<4x256xf32>
    %15 = arith.mulf %12, %14 : vector<4x256xf32>
    %16 = vector.extract_strided_slice %6 {offsets = [0, 127], sizes = [4, 256], strides = [1, 1]} : vector<4x512xf32> to vector<4x256xf32>
    %17 = vector.extract_strided_slice %2 {offsets = [0, 0], sizes = [1, 256], strides = [1, 1]} : vector<3x256xf32> to vector<1x256xf32>
    %18 = vector.broadcast %17 : vector<1x256xf32> to vector<4x256xf32>
    %19 = arith.mulf %16, %18 : vector<4x256xf32>
    %20 = vector.extract_strided_slice %6 {offsets = [0, 128], sizes = [4, 256], strides = [1, 1]} : vector<4x512xf32> to vector<4x256xf32>
    %21 = vector.extract_strided_slice %6 {offsets = [0, 129], sizes = [4, 256], strides = [1, 1]} : vector<4x512xf32> to vector<4x256xf32>
    %22 = vector.extract_strided_slice %2 {offsets = [2, 0], sizes = [1, 256], strides = [1, 1]} : vector<3x256xf32> to vector<1x256xf32>
    %23 = vector.broadcast %22 : vector<1x256xf32> to vector<4x256xf32>
    %24 = arith.mulf %21, %23 : vector<4x256xf32>
    %25 = vector.extract_strided_slice %6 {offsets = [0, 143], sizes = [4, 256], strides = [1, 1]} : vector<4x512xf32> to vector<4x256xf32>
    %26 = vector.extract_strided_slice %2 {offsets = [0, 0], sizes = [1, 256], strides = [1, 1]} : vector<3x256xf32> to vector<1x256xf32>
    %27 = vector.broadcast %26 : vector<1x256xf32> to vector<4x256xf32>
    %28 = arith.mulf %25, %27 : vector<4x256xf32>
    %29 = vector.extract_strided_slice %6 {offsets = [0, 144], sizes = [4, 256], strides = [1, 1]} : vector<4x512xf32> to vector<4x256xf32>
    %30 = vector.extract_strided_slice %6 {offsets = [0, 145], sizes = [4, 256], strides = [1, 1]} : vector<4x512xf32> to vector<4x256xf32>
    %31 = vector.extract_strided_slice %2 {offsets = [2, 0], sizes = [1, 256], strides = [1, 1]} : vector<3x256xf32> to vector<1x256xf32>
    %32 = vector.broadcast %31 : vector<1x256xf32> to vector<4x256xf32>
    %33 = arith.mulf %30, %32 : vector<4x256xf32>
    %34 = tpu.concatenate %10, %11, %15, %19, %20, %24, %28, %29, %33 in 0 : vector<4x256xf32>, vector<4x256xf32>, vector<4x256xf32>, vector<4x256xf32>, vector<4x256xf32>, vector<4x256xf32>, vector<4x256xf32>, vector<4x256xf32>, vector<4x256xf32> -> vector<36x256xf32>
    %cst_8 = arith.constant dense<0.000000e+00> : vector<4x256xf32>
    %35 = tpu.matmul %0, %34, %cst_8 {dimension_numbers = #tpu.dot_dimension_numbers<[1], [0], [0], [1], [0, 0, 1, 1], [], []>} : vector<4x36xf32>, vector<36x256xf32>, vector<4x256xf32> -> vector<4x256xf32>
    %36 = vector.broadcast %1 : vector<4x1xf32> to vector<4x256xf32>
    %37 = arith.addf %35, %36 : vector<4x256xf32>
    %cst_9 = arith.constant 0.000000e+00 : f32
    %38 = vector.broadcast %cst_9 : f32 to vector<4x256xf32>
    %39 = arith.maximumf %37, %38 : vector<4x256xf32>
    %40 = tpu.concatenate %39, %4 in 0 : vector<4x256xf32>, vector<4x256xf32> -> vector<8x256xf32>
    %c0_10 = arith.constant 0 : index
    %c0_11 = arith.constant 0 : index
    %c0_12 = arith.constant 0 : index
    %41 = vector.load %arg5[%c0_10, %c0_11, %c0_12] : memref<1x8x256xf32, #tpu.memory_space<vmem>>, vector<1x8x256xf32>
    %42 = vector.shape_cast %41 : vector<1x8x256xf32> to vector<8x256xf32>
    %43 = vector.shape_cast %40 : vector<8x256xf32> to vector<1x8x256xf32>
    tpu.vector_store %arg5[%c0_10, %c0_11, %c0_12], %43 {strides = array<i32>} : memref<1x8x256xf32, #tpu.memory_space<vmem>>, vector<1x8x256xf32>,
    return
  }
  func.func @transform_0(%arg0: i32) -> (i32, i32, i32) {
    %c0_i32 = arith.constant 0 : i32
    %c0_i32_0 = arith.constant 0 : i32
    %c0_i32_1 = arith.constant 0 : i32
    return %arg0, %c0_i32, %c0_i32_0 : i32, i32, i32
  }
  func.func @transform_1(%arg0: i32) -> (i32, i32) {
    %c0_i32 = arith.constant 0 : i32
    %c0_i32_0 = arith.constant 0 : i32
    %c0_i32_1 = arith.constant 0 : i32
    return %c0_i32, %c0_i32_0 : i32, i32
  }
  func.func @transform_2(%arg0: i32) -> (i32, i32) {
    %c0_i32 = arith.constant 0 : i32
    %c0_i32_0 = arith.constant 0 : i32
    %c0_i32_1 = arith.constant 0 : i32
    return %c0_i32, %c0_i32_0 : i32, i32
  }
  func.func @transform_3(%arg0: i32) -> (i32, i32) {
    %c0_i32 = arith.constant 0 : i32
    %c0_i32_0 = arith.constant 0 : i32
    %c0_i32_1 = arith.constant 0 : i32
    return %c0_i32, %c0_i32_0 : i32, i32
  }
  func.func @transform_4(%arg0: i32) -> (i32, i32, i32) {
    %c0_i32 = arith.constant 0 : i32
    %c0_i32_0 = arith.constant 0 : i32
    %c0_i32_1 = arith.constant 0 : i32
    return %arg0, %c0_i32, %c0_i32_0 : i32, i32, i32
  }
}

</mosaic_0001>

<llo_original>
// kernel: tpu_custom_call.1
$region0: #{tpu_custom_call.1}
  #allocation0 [shape = 'u32[]', space=smem, size = 0x4, offset = 0x4, fixed_abs, tag = 'smem constant byte address 0x4 - core index']
  #allocation1 [shape = 'u32[144,128]{1,0:T(1,128)}', space=vmem, size = 0x12000, scoped, tag = 'internal scratch']
  %s0 = inlined_call_operand.hbm [shape: f32[2,4,256], index: 0, kind: input, shape index: {}]
  %s1 = inlined_call_operand.vmem [shape: f32[4,36], index: 1, kind: input, shape index: {}]
  %s2 = inlined_call_operand.vmem [shape: f32[4,1], index: 2, kind: input, shape index: {}]
  %s3 = inlined_call_operand.vmem [shape: f32[3,256], index: 3, kind: input, shape index: {}]
  %s4 = inlined_call_operand.hbm [shape: f32[2,8,256], index: 4, kind: output, shape index: {}]
  %s5 = sld [smem:[#allocation0]]
  $region53: #{tpu_custom_call.1} parent=0
    _
  %s7 = ssub.s32 1, %s5
  %s8 = scalar_select 0, %s7, %s5
  $region1: #{tpu_custom_call.1} parent=0
    #allocation2 [shape = 'u8[8192]{0}', space=vmem, size = 0x2000, scoped, tag = 'input window, operand 0']
    #allocation3 [shape = 's32[2]{0}', space=sflag, size = 0x8, scoped, tag = 'scoped memory for tpu_custom_call.1']
    #allocation4 [shape = 's32[2]{0}', space=sflag, size = 0x8, scoped, tag = 'scoped memory for tpu_custom_call.1']
    #allocation5 [shape = 'u8[16384]{0}', space=vmem, size = 0x4000, scoped, tag = 'output window, operand 0']
    %9 = vsyncpa [#allocation3], 0
    %s10 = scalar_lea.sflag [#allocation3], 1
    %11 = vsyncpa %s10, 0
    %12 = vsyncpa [#allocation4], 0
    %s13 = scalar_lea.sflag [#allocation4], 1
    %14 = vsyncpa %s13, 0
    loop: start=0, step=1, limit=4
    $region2: #{tpu_custom_call.1} parent=1 // loop_pre_header
      _
    $region3: #{tpu_custom_call.1} parent=1 // loop_header
      %s16 = sphi 0, %s20
      %p17 = scmp.ge.s32.totalorder %s16, 4
      %s26 = sphi 0, %s28
      %s29 = sphi 0, %s26
      %s30 = sphi 0, %s29
      %s46 = sphi 0, %s30
      %s50 = sphi 0, %s50
      %s52 = sphi 0, %s50
      %s53 = sphi 0, %s52
      %s67 = sphi 0, %s53
      %s71 = sphi 0, %s71
      %s73 = sphi 0, %s71
      %s74 = sphi 0, %s73
      %s88 = sphi 0, %s74
      %s92 = sphi 0, %s92
      %s94 = sphi 0, %s92
      %s95 = sphi 0, %s94
      %s109 = sphi 0, %s95
      %s115 = sphi 0, %s117
      %s118 = sphi 0, %s115
      %s119 = sphi 0, %s118
      %s135 = sphi 0, %s119
    $region4: #{tpu_custom_call.1} parent=1 // loop_header_branch
      %19 = sbr.rel (%p17) target = $region8
    $region5: #{tpu_custom_call.1} parent=1 // loop_body
      %s21 = ssub.s32 %s16, 1
      %s22 = ssub.s32 %s16, 2
      %s23 = sadd.s32 %s16, 1
      %s24 = ssub.s32 %s16, %s23
      %p25 = scmp.eq.s32.totalorder %s24, 0
      %s27 = sadd.s32 %s26, 1
      %s28 = scalar_select %p25, %s26, %s27
      %p31 = pneg %p25
      %p32 = scmp.eq.s32.totalorder %s16, 1
      %p33 = por %p31, %p32
      %p34 = scmp.ne.s32.totalorder %s26, %s29
      %p35 = scmp.eq.s32.totalorder %s16, 0
      %p36 = por %p34, %p35
      %p37 = scmp.ne.s32.totalorder %s26, %s29
      %p38 = scmp.eq.s32.totalorder %s21, 1
      %p39 = por %p37, %p38
      %p40 = scmp.ne.s32.totalorder %s29, %s30
      %p41 = scmp.eq.s32.totalorder %s21, 0
      %p42 = por %p40, %p41
      %p43 = scmp.ne.s32.totalorder %s29, %s30
      %p44 = scmp.eq.s32.totalorder %s22, 1
      %p45 = por %p43, %p44
      %p47 = scmp.ne.s32.totalorder %s30, %s46
      %p48 = scmp.eq.s32.totalorder %s22, 0
      %p49 = por %p47, %p48
      %s51 = sadd.s32 %s50, 1
      %p54 = scmp.eq.s32.totalorder %s16, 1
      %p55 = scmp.ne.s32.totalorder %s50, %s52
      %p56 = scmp.eq.s32.totalorder %s16, 0
      %p57 = por %p55, %p56
      %p58 = scmp.ne.s32.totalorder %s50, %s52
      %p59 = scmp.eq.s32.totalorder %s21, 1
      %p60 = por %p58, %p59
      %p61 = scmp.ne.s32.totalorder %s52, %s53
      %p62 = scmp.eq.s32.totalorder %s21, 0
      %p63 = por %p61, %p62
      %p64 = scmp.ne.s32.totalorder %s52, %s53
      %p65 = scmp.eq.s32.totalorder %s22, 1
      %p66 = por %p64, %p65
      %p68 = scmp.ne.s32.totalorder %s53, %s67
      %p69 = scmp.eq.s32.totalorder %s22, 0
      %p70 = por %p68, %p69
      %s72 = sadd.s32 %s71, 1
      %p75 = scmp.eq.s32.totalorder %s16, 1
      %p76 = scmp.ne.s32.totalorder %s71, %s73
      %p77 = scmp.eq.s32.totalorder %s16, 0
      %p78 = por %p76, %p77
      %p79 = scmp.ne.s32.totalorder %s71, %s73
      %p80 = scmp.eq.s32.totalorder %s21, 1
      %p81 = por %p79, %p80
      %p82 = scmp.ne.s32.totalorder %s73, %s74
      %p83 = scmp.eq.s32.totalorder %s21, 0
      %p84 = por %p82, %p83
      %p85 = scmp.ne.s32.totalorder %s73, %s74
      %p86 = scmp.eq.s32.totalorder %s22, 1
      %p87 = por %p85, %p86
      %p89 = scmp.ne.s32.totalorder %s74, %s88
      %p90 = scmp.eq.s32.totalorder %s22, 0
      %p91 = por %p89, %p90
      %s93 = sadd.s32 %s92, 1
      %p96 = scmp.eq.s32.totalorder %s16, 1
      %p97 = scmp.ne.s32.totalorder %s92, %s94
      %p98 = scmp.eq.s32.totalorder %s16, 0
      %p99 = por %p97, %p98
      %p100 = scmp.ne.s32.totalorder %s92, %s94
      %p101 = scmp.eq.s32.totalorder %s21, 1
      %p102 = por %p100, %p101
      %p103 = scmp.ne.s32.totalorder %s94, %s95
      %p104 = scmp.eq.s32.totalorder %s21, 0
      %p105 = por %p103, %p104
      %p106 = scmp.ne.s32.totalorder %s94, %s95
      %p107 = scmp.eq.s32.totalorder %s22, 1
      %p108 = por %p106, %p107
      %p110 = scmp.ne.s32.totalorder %s95, %s109
      %p111 = scmp.eq.s32.totalorder %s22, 0
      %p112 = por %p110, %p111
      %s113 = ssub.s32 %s16, %s23
      %p114 = scmp.eq.s32.totalorder %s113, 0
      %s116 = sadd.s32 %s115, 1
      %s117 = scalar_select %p114, %s115, %s116
      %p120 = pneg %p114
      %p121 = scmp.eq.s32.totalorder %s16, 1
      %p122 = por %p120, %p121
      %p123 = scmp.ne.s32.totalorder %s115, %s118
      %p124 = scmp.eq.s32.totalorder %s16, 0
      %p125 = por %p123, %p124
      %p126 = scmp.ne.s32.totalorder %s115, %s118
      %p127 = scmp.eq.s32.totalorder %s21, 1
      %p128 = por %p126, %p127
      %p129 = scmp.ne.s32.totalorder %s118, %s119
      %p130 = scmp.eq.s32.totalorder %s21, 0
      %p131 = por %p129, %p130
      %p132 = scmp.ne.s32.totalorder %s118, %s119
      %p133 = scmp.eq.s32.totalorder %s22, 1
      %p134 = por %p132, %p133
      %p136 = scmp.ne.s32.totalorder %s119, %s135
      %p137 = scmp.eq.s32.totalorder %s22, 0
      %p138 = por %p136, %p137
      %p139 = scmp.le.s32.totalorder 1, %s16
      %p140 = scmp.lt.s32.totalorder %s16, 3
      %p141 = pnand %p139, %p140
      %p142 = pneg %p141
      // Predicated region
      $region9: #{tpu_custom_call.1} parent=5 // pred_check
        _
      $region10: #{tpu_custom_call.1} parent=5 // pred_check_branch
        %144 = sbr.rel (%p141) target = $region12
      $region11: #{tpu_custom_call.1} parent=5 // pred_region
        %s145 = ssub.s32 %s16, 1
        // Predicated region
        $region13: #{tpu_custom_call.1} parent=11 // pred_check
          %p146 = pneg %p63
        $region14: #{tpu_custom_call.1} parent=11 // pred_check_branch
          %148 = sbr.rel (%p146) target = $region16
        $region15: #{tpu_custom_call.1} parent=11 // pred_region
          _
        $region16: #{tpu_custom_call.1} parent=11 // pred_fallthru
          _
        // Predicated region
        $region17: #{tpu_custom_call.1} parent=11 // pred_check
          %p149 = pneg %p84
        $region18: #{tpu_custom_call.1} parent=11 // pred_check_branch
          %151 = sbr.rel (%p149) target = $region20
        $region19: #{tpu_custom_call.1} parent=11 // pred_region
          _
        $region20: #{tpu_custom_call.1} parent=11 // pred_fallthru
          _
        // Predicated region
        $region21: #{tpu_custom_call.1} parent=11 // pred_check
          %p152 = pneg %p105
        $region22: #{tpu_custom_call.1} parent=11 // pred_check_branch
          %154 = sbr.rel (%p152) target = $region24
        $region23: #{tpu_custom_call.1} parent=11 // pred_region
          _
        $region24: #{tpu_custom_call.1} parent=11 // pred_fallthru
          _
      $region12: #{tpu_custom_call.1} parent=5 // pred_fallthru
        _
      %p155 = scmp.lt.s32.totalorder %s16, 2
      // Predicated region
      $region25: #{tpu_custom_call.1} parent=5 // pred_check
        %p156 = pneg %p155
      $region26: #{tpu_custom_call.1} parent=5 // pred_check_branch
        %158 = sbr.rel (%p156) target = $region28
      $region27: #{tpu_custom_call.1} parent=5 // pred_region
        // Predicated region
        $region29: #{tpu_custom_call.1} parent=27 // pred_check
          %p159 = pneg %p36
        $region30: #{tpu_custom_call.1} parent=27 // pred_check_branch
          %161 = sbr.rel (%p159) target = $region32
        $region31: #{tpu_custom_call.1} parent=27 // pred_region
          %s162 = sand.u32 %s26, 1
          %s163 = scalar_lea.sflag [#allocation3], %s162
          %s164 = sand.u32 %s26, 1
          %s165 = smul.addr %s164, 8
          %s166 = scalar_lea.vmem [#allocation2], %s165
          %s168 = ssub.s32 128, 128
          %169 = vsyncadd %s163, %s168
          %s170 = smul.addr %s16, 2
          %s171 = smul.addr %s170, 64
          %s172 = scalar_lea.hbm %s0, %s171
          %s174 = sshll.u32 %s166, 4
          %s175 = int_to_ptr.vmem [resolvable:$true] %s174
          %177 = dma.hbm_to_vmem [thread:$0]  %s172, 128, %s175, %s163
        $region32: #{tpu_custom_call.1} parent=27 // pred_fallthru
          _
      $region28: #{tpu_custom_call.1} parent=5 // pred_fallthru
        _
      %p178 = scmp.le.s32.totalorder 1, %s16
      %p179 = scmp.lt.s32.totalorder %s16, 3
      %p180 = pnand %p178, %p179
      %p181 = pneg %p180
      // Predicated region
      $region33: #{tpu_custom_call.1} parent=5 // pred_check
        _
      $region34: #{tpu_custom_call.1} parent=5 // pred_check_branch
        %183 = sbr.rel (%p180) target = $region36
      $region35: #{tpu_custom_call.1} parent=5 // pred_region
        %s184 = ssub.s32 %s16, 1
        %s185 = sand.u32 %s29, 1
        %s186 = scalar_lea.sflag [#allocation3], %s185
        %s187 = sand.u32 %s29, 1
        %s188 = smul.addr %s187, 8
        %s189 = scalar_lea.vmem [#allocation2], %s188
        // Predicated region
        $region37: #{tpu_custom_call.1} parent=35 // pred_check
          %p190 = pneg %p42
        $region38: #{tpu_custom_call.1} parent=35 // pred_check_branch
          %192 = sbr.rel (%p190) target = $region40
        $region39: #{tpu_custom_call.1} parent=35 // pred_region
          %193 = dma.done %s186, 128
        $region40: #{tpu_custom_call.1} parent=35 // pred_fallthru
          _
        %s194 = sand.u32 %s29, 1
        %s195 = scalar_lea.sflag [#allocation3], %s194
        %s196 = sand.u32 %s29, 1
        %s197 = smul.addr %s196, 8
        %s198 = scalar_lea.vmem [#allocation2], %s197
        %p199 = pneg %p42
        %p200 = pneg %p39
        %p201 = pneg %p63
        %p202 = pneg %p60
        %p203 = pneg %p84
        %p204 = pneg %p81
        %p205 = pneg %p105
        %p206 = pneg %p102
        %p207 = pneg %p131
        %p208 = pneg %p128
        %s209 = sand.u32 %s118, 1
        %s210 = scalar_lea.sflag [#allocation4], %s209
        %s211 = sand.u32 %s118, 1
        %s212 = smul.addr %s211, 16
        %s213 = scalar_lea.vmem [#allocation5], %s212
        %v214 = vld [vmem:[%s1] sm:$0xf]
        %v215 = vld [vmem:[%s2] sm:$0xf]
        %v216 = vld [vmem:[%s3] sm:$0x77]
        %v217 = vld [vmem:[%s189] sm:$0xff]
        %v219 = vcombine.high %v217, %v217
        %v222 = vlaneseq
        %v223 = vshrl.u32 %v222, 7
        %v224 = vsub.s32 0, %v223
        %v225 = vrot.slane %v216, %v224
        %v226 = vlaneseq
        %v227 = vshrl.u32 %v226, 7
        %v228 = vsub.s32 4, %v227
        %v229 = vrot.slane %v216, %v228
        %v232 = vlaneseq
        %v233 = vshrl.u32 %v232, 7
        %v234 = vsub.s32 0, %v233
        %v235 = vrot.slane %v225, %v234
        %v236 = vlaneseq
        %v237 = vshrl.u32 %v236, 7
        %v238 = vsub.s32 0, %v237
        %v239 = vrot.slane %v229, %v238
        %242 = vrot.lane.b32.xlu0 %v235, 111
        %v243 = vpop.permute.xlu0 %242
        %244 = vrot.lane.b32.xlu0 %v239, 111
        %v245 = vpop.permute.xlu0 %244
        %vm246 = vcmask 908288
        %v247 = vsel %vm246, %v243, %v245
        %v251 = vmul.f32 %v243, 0.0
        %v252 = vmul.f32 %v217, %v247
        %v253 = vmul.f32 %v219, %v245
        %v254 = vlaneseq
        %v255 = vshrl.u32 %v254, 7
        %v256 = vsub.s32 2, %v255
        %v257 = vrot.slane %v216, %v256
        %v258 = vlaneseq
        %v259 = vshrl.u32 %v258, 7
        %v260 = vsub.s32 6, %v259
        %v261 = vrot.slane %v216, %v260
        %v264 = vlaneseq
        %v265 = vshrl.u32 %v264, 7
        %v266 = vsub.s32 2, %v265
        %v267 = vrot.slane %v257, %v266
        %v268 = vlaneseq
        %v269 = vshrl.u32 %v268, 7
        %v270 = vsub.s32 2, %v269
        %v271 = vrot.slane %v261, %v270
        %274 = vrot.lane.b32.xlu0 %v267, 113
        %v275 = vpop.permute.xlu0 %274
        %276 = vrot.lane.b32.xlu0 %v271, 113
        %v277 = vpop.permute.xlu0 %276
        %vm278 = vcmask 924672
        %v279 = vsel %vm278, %v275, %v277
        %v283 = vmul.f32 %v275, 0.0
        %v284 = vmul.f32 %v217, %v279
        %v285 = vmul.f32 %v219, %v277
        %286 = vrot.lane.b32.xlu0 %v235, 127
        %v287 = vpop.permute.xlu0 %286
        %288 = vrot.lane.b32.xlu0 %v239, 127
        %v289 = vpop.permute.xlu0 %288
        %vm290 = vcmask 1039360
        %v291 = vsel %vm290, %v287, %v289
        %v295 = vmul.f32 %v287, 0.0
        %v296 = vmul.f32 %v217, %v291
        %v297 = vmul.f32 %v219, %v289
        %298 = vrot.lane.b32.xlu0 %v267, 1
        %v299 = vpop.permute.xlu0 %298
        %300 = vrot.lane.b32.xlu0 %v271, 1
        %v301 = vpop.permute.xlu0 %300
        %vm302 = vcmask 7168
        %v303 = vsel %vm302, %v299, %v301
        %v307 = vmul.f32 %v217, %v299
        %v308 = vmul.f32 %v219, %v303
        %v309 = vmul.f32 %v301, 0.0
        %310 = vrot.lane.b32.xlu0 %v235, 15
        %v311 = vpop.permute.xlu0 %310
        %312 = vrot.lane.b32.xlu0 %v239, 15
        %v313 = vpop.permute.xlu0 %312
        %vm314 = vcmask 121856
        %v315 = vsel %vm314, %v311, %v313
        %v319 = vmul.f32 %v217, %v311
        %v320 = vmul.f32 %v219, %v315
        %v321 = vmul.f32 %v313, 0.0
        %322 = vrot.lane.b32.xlu0 %v267, 17
        %v323 = vpop.permute.xlu0 %322
        %324 = vrot.lane.b32.xlu0 %v271, 17
        %v325 = vpop.permute.xlu0 %324
        %vm326 = vcmask 138240
        %v327 = vsel %vm326, %v323, %v325
        %v331 = vmul.f32 %v217, %v323
        %v332 = vmul.f32 %v219, %v327
        %v333 = vmul.f32 %v325, 0.0
        %v335 = vrot.slane 0.0, 4
        %v336 = vrot.slane %v217, 4
        %v337 = vrot.slane %v219, 4
        %338 = vrot.lane.b32.xlu0 %v335, 127
        %v339 = vpop.permute.xlu0 %338
        %340 = vrot.lane.b32.xlu0 %v336, 127
        %v341 = vpop.permute.xlu0 %340
        %342 = vrot.lane.b32.xlu0 %v337, 127
        %v343 = vpop.permute.xlu0 %342
        %v344 = vsel %vm290, %v339, %v341
        %v345 = vsel %vm290, %v341, %v343
        %352 = vrot.lane.b32.xlu0 %v283, 126
        %v353 = vpop.permute.xlu0 %352
        %354 = vrot.lane.b32.xlu0 %v284, 126
        %v355 = vpop.permute.xlu0 %354
        %356 = vrot.lane.b32.xlu0 %v285, 126
        %v357 = vpop.permute.xlu0 %356
        %vm358 = vcmask 1031168
        %v359 = vsel %vm358, %v353, %v355
        %v360 = vsel %vm358, %v355, %v357
        %v367 = vrot.slane %v295, 4
        %v368 = vrot.slane %v296, 4
        %v369 = vrot.slane %v297, 4
        %370 = vrot.lane.b32.xlu0 %v367, 112
        %v371 = vpop.permute.xlu0 %370
        %372 = vrot.lane.b32.xlu0 %v368, 112
        %v373 = vpop.permute.xlu0 %372
        %374 = vrot.lane.b32.xlu0 %v369, 112
        %v375 = vpop.permute.xlu0 %374
        %vm376 = vcmask 916480
        %v377 = vsel %vm376, %v371, %v373
        %v378 = vsel %vm376, %v373, %v375
        %382 = vrot.lane.b32.xlu0 %v217, 111
        %v383 = vpop.permute.xlu0 %382
        %384 = vrot.lane.b32.xlu0 %v219, 111
        %v385 = vpop.permute.xlu0 %384
        %v386 = vsel %vm246, %v383, %v385
        %v393 = vrot.slane %v307, 4
        %v394 = vrot.slane %v308, 4
        %v395 = vrot.slane %v309, 4
        %396 = vrot.lane.b32.xlu0 %v393, 110
        %v397 = vpop.permute.xlu0 %396
        %398 = vrot.lane.b32.xlu0 %v394, 110
        %v399 = vpop.permute.xlu0 %398
        %400 = vrot.lane.b32.xlu0 %v395, 110
        %v401 = vpop.permute.xlu0 %400
        %vm402 = vcmask 900096
        %v403 = vsel %vm402, %v397, %v399
        %v404 = vsel %vm402, %v399, %v401
        %411 = vrot.lane.b32.xlu0 %v319, 96
        %v412 = vpop.permute.xlu0 %411
        %413 = vrot.lane.b32.xlu0 %v320, 96
        %v414 = vpop.permute.xlu0 %413
        %415 = vrot.lane.b32.xlu0 %v321, 96
        %v416 = vpop.permute.xlu0 %415
        %vm417 = vcmask 785408
        %v418 = vsel %vm417, %v412, %v414
        %v419 = vsel %vm417, %v414, %v416
        %423 = vrot.lane.b32.xlu0 %v336, 95
        %v424 = vpop.permute.xlu0 %423
        %425 = vrot.lane.b32.xlu0 %v337, 95
        %v426 = vpop.permute.xlu0 %425
        %427 = vrot.lane.b32.xlu0 %v335, 95
        %v428 = vpop.permute.xlu0 %427
        %vm429 = vcmask 777216
        %v430 = vsel %vm429, %v424, %v426
        %v431 = vsel %vm429, %v426, %v428
        %438 = vrot.lane.b32.xlu0 %v331, 94
        %v439 = vpop.permute.xlu0 %438
        %440 = vrot.lane.b32.xlu0 %v332, 94
        %v441 = vpop.permute.xlu0 %440
        %442 = vrot.lane.b32.xlu0 %v333, 94
        %v443 = vpop.permute.xlu0 %442
        %vm444 = vcmask 769024
        %v445 = vsel %vm444, %v439, %v441
        %v446 = vsel %vm444, %v441, %v443
        %vm447 = vcmask 1043456
        %v448 = vsel %vm447, %v251, %v344
        %v449 = vsel %vm447, %v252, %v345
        %v450 = vsel %vm447, %v253, %v343
        %v451 = vsel %vm447, %v359, %v377
        %v452 = vsel %vm447, %v360, %v378
        %v453 = vsel %vm447, %v357, %v375
        %v454 = vsel %vm447, %v383, %v397
        %v455 = vsel %vm447, %v386, %v403
        %v456 = vsel %vm447, %v385, %v404
        %v457 = vsel %vm447, %v412, %v424
        %v458 = vsel %vm447, %v418, %v430
        %v459 = vsel %vm447, %v419, %v431
        %461 = vset.pattern.permute.xlu0 0
        %462 = vperm.xlu0 %461, %v215
        %v463 = vpop.permute.xlu0 %462
        %477 = vrot.lane.b32.xlu0 %v448, 17
        %v478 = vpop.permute.xlu0 %477
        %479 = vrot.lane.b32.xlu0 %v449, 17
        %v480 = vpop.permute.xlu0 %479
        %481 = vrot.lane.b32.xlu0 %v450, 17
        %v482 = vpop.permute.xlu0 %481
        %483 = vrot.lane.b32.xlu0 %v451, 17
        %v484 = vpop.permute.xlu0 %483
        %485 = vrot.lane.b32.xlu0 %v452, 17
        %v486 = vpop.permute.xlu0 %485
        %487 = vrot.lane.b32.xlu0 %v453, 17
        %v488 = vpop.permute.xlu0 %487
        %489 = vrot.lane.b32.xlu0 %v454, 17
        %v490 = vpop.permute.xlu0 %489
        %491 = vrot.lane.b32.xlu0 %v455, 17
        %v492 = vpop.permute.xlu0 %491
        %493 = vrot.lane.b32.xlu0 %v456, 17
        %v494 = vpop.permute.xlu0 %493
        %495 = vrot.lane.b32.xlu0 %v457, 17
        %v496 = vpop.permute.xlu0 %495
        %497 = vrot.lane.b32.xlu0 %v458, 17
        %v498 = vpop.permute.xlu0 %497
        %499 = vrot.lane.b32.xlu0 %v459, 17
        %v500 = vpop.permute.xlu0 %499
        %501 = vrot.lane.b32.xlu0 %v439, 17
        %v502 = vpop.permute.xlu0 %501
        %503 = vrot.lane.b32.xlu0 %v445, 17
        %v504 = vpop.permute.xlu0 %503
        %505 = vrot.lane.b32.xlu0 %v446, 17
        %v506 = vpop.permute.xlu0 %505
        %v507 = vsel %vm326, %v478, %v480
        %v508 = vsel %vm326, %v480, %v482
        %v509 = vsel %vm326, %v484, %v486
        %v510 = vsel %vm326, %v486, %v488
        %v511 = vsel %vm326, %v490, %v492
        %v512 = vsel %vm326, %v492, %v494
        %v513 = vsel %vm326, %v496, %v498
        %v514 = vsel %vm326, %v498, %v500
        %v515 = vsel %vm326, %v502, %v504
        %v516 = vsel %vm326, %v504, %v506
        %vm525 = vcmask 293888
        %v527 = vsel %vm525, %v214, 0
        %v529 = vsel %vm447, %v515, 0
        %v531 = vsel %vm447, %v516, 0
        %533 = vmatprep.subr.mxu0 %v508
        %534 = vmatpush1.msra.mxu0 %v507
        %535 = vmatprep.subr.mxu0 %v510
        %536 = vmatpush1.msra.mxu0 %v509
        %537 = vmatprep.subr.mxu0 %v512
        %538 = vmatpush1.msra.mxu0 %v511
        %539 = vmatprep.subr.mxu0 %v514
        %540 = vmatpush1.msra.mxu0 %v513
        %541 = vmatprep.subr.mxu0 %v531
        %542 = vmatpush1.msra.mxu0 %v529
        %543 = vmatprep.subr.mxu0 0.0
        %544 = vmatpush1.msra.mxu0 0.0
        %545 = vmatprep.subr.mxu0 0.0
        %546 = vmatpush1.msra.mxu0 0.0
        %547 = vmatprep.subr.mxu0 0.0
        %548 = vmatpush1.msra.mxu0 0.0
        %549 = vmatprep.subr.mxu0 0.0
        %550 = vmatpush1.msra.mxu0 0.0
        %551 = vmatprep.subr.mxu0 0.0
        %552 = vmatpush1.msra.mxu0 0.0
        %553 = vmatprep.subr.mxu0 0.0
        %554 = vmatpush1.msra.mxu0 0.0
        %555 = vmatprep.subr.mxu0 0.0
        %556 = vmatpush1.msra.mxu0 0.0
        %557 = vmatprep.subr.mxu0 0.0
        %558 = vmatpush1.msra.mxu0 0.0
        %559 = vmatprep.subr.mxu0 0.0
        %560 = vmatpush1.msra.mxu0 0.0
        %561 = vmatprep.subr.mxu0 0.0
        %562 = vmatpush1.msra.mxu0 0.0
        %563 = vmatprep.subr.mxu0 0.0
        %564 = vmatpush1.msra.mxu0 0.0
        %565 = vmatprep.subr.mxu0 0.0
        %566 = vmatpush1.msra.mxu0 0.0
        %567 = vmatprep.subr.mxu0 0.0
        %568 = vmatpush1.msra.mxu0 0.0
        %569 = vmatprep.subr.mxu0 0.0
        %570 = vmatpush1.msra.mxu0 0.0
        %571 = vmatprep.subr.mxu0 0.0
        %572 = vmatpush1.msra.mxu0 0.0
        %573 = vmatprep.subr.mxu0 0.0
        %574 = vmatpush1.msra.mxu0 0.0
        %575 = vmatprep.subr.mxu0 0.0
        %576 = vmatpush1.msra.mxu0 0.0
        %577 = vmatprep.subr.mxu0 0.0
        %578 = vmatpush1.msra.mxu0 0.0
        %579 = vmatprep.subr.mxu0 0.0
        %580 = vmatpush1.msra.mxu0 0.0
        %581 = vmatprep.subr.mxu0 0.0
        %582 = vmatpush1.msra.mxu0 0.0
        %583 = vmatprep.subr.mxu0 0.0
        %584 = vmatpush1.msra.mxu0 0.0
        %585 = vmatprep.subr.mxu0 0.0
        %586 = vmatpush1.msra.mxu0 0.0
        %587 = vmatprep.subr.mxu0 0.0
        %588 = vmatpush1.msra.mxu0 0.0
        %589 = vmatprep.subr.mxu0 0.0
        %590 = vmatpush1.msra.mxu0 0.0
        %591 = vmatprep.subr.mxu0 0.0
        %592 = vmatpush1.msra.mxu0 0.0
        %593 = vmatprep.subr.mxu0 0.0
        %594 = vmatpush1.msra.mxu0 0.0
        %595 = vmatprep.subr.mxu0 0.0
        %596 = vmatpush1.msra.mxu0 0.0
        %597 = vmatprep.mubr.f32.mxu0 0.0
        %598 = vmatmul.mubr.f32.gmra.mrb[0].mxu0 %v527
        %v599 = vpop.f32.mrb[0].mxu0
        %v600 = vadd.f32 %v463, %v599
        %v601 = vpop.f32.mrb[0].mxu0
        %v602 = vadd.f32 %v463, %v601
        %603 = vdwg.mxu0
        %v604 = vmax.f32 %v600, 0.0
        %v605 = vmax.f32 %v602, 0.0
        %v606 = vcombine.low %v217, %v217
        %v608 = vsel %vm447, %v604, %v606
        %v609 = vsel %vm447, %v605, %v217
        %610 = vst [vmem:[%s213] sm:$0xff] %v608
        %611 = vst [vmem:[%s213 + $0x8] sm:$0xff] %v609
        %s612 = sand.u32 %s118, 1
        %s613 = scalar_lea.sflag [#allocation4], %s612
        %s614 = sand.u32 %s118, 1
        %s615 = smul.addr %s614, 16
        %s616 = scalar_lea.vmem [#allocation5], %s615
        // Predicated region
        $region41: #{tpu_custom_call.1} parent=35 // pred_check
          %p617 = pneg %p128
        $region42: #{tpu_custom_call.1} parent=35 // pred_check_branch
          %619 = sbr.rel (%p617) target = $region44
        $region43: #{tpu_custom_call.1} parent=35 // pred_region
          %s621 = ssub.s32 256, 256
          %622 = vsyncadd %s613, %s621
          %s623 = smul.addr %s21, 2
          %s624 = smul.addr %s623, 128
          %s625 = scalar_lea.hbm %s4, %s624
          %s627 = sshll.u32 %s616, 4
          %s628 = int_to_ptr.vmem [resolvable:$true] %s627
          %630 = dma.vmem_to_hbm [thread:$0]  %s628, 256, %s625, %s613
        $region44: #{tpu_custom_call.1} parent=35 // pred_fallthru
          _
      $region36: #{tpu_custom_call.1} parent=5 // pred_fallthru
        _
      %p631 = scmp.le.s32.totalorder 2, %s16
      // Predicated region
      $region45: #{tpu_custom_call.1} parent=5 // pred_check
        %p632 = pneg %p631
      $region46: #{tpu_custom_call.1} parent=5 // pred_check_branch
        %634 = sbr.rel (%p632) target = $region48
      $region47: #{tpu_custom_call.1} parent=5 // pred_region
        %s635 = ssub.s32 %s16, 2
        // Predicated region
        $region49: #{tpu_custom_call.1} parent=47 // pred_check
          %p636 = pneg %p134
        $region50: #{tpu_custom_call.1} parent=47 // pred_check_branch
          %638 = sbr.rel (%p636) target = $region52
        $region51: #{tpu_custom_call.1} parent=47 // pred_region
          %s639 = sand.u32 %s119, 1
          %s640 = scalar_lea.sflag [#allocation4], %s639
          %s641 = sand.u32 %s119, 1
          %s642 = smul.addr %s641, 16
          %s643 = scalar_lea.vmem [#allocation5], %s642
          %644 = dma.done %s640, 256
        $region52: #{tpu_custom_call.1} parent=47 // pred_fallthru
          _
      $region48: #{tpu_custom_call.1} parent=5 // pred_fallthru
        _
    $region6: #{tpu_custom_call.1} parent=1 // loop_footer
      %s20 = sadd.s32 1, %s16
    $region7: #{tpu_custom_call.1} parent=1 // loop_footer_branch
      %15 = sbr.rel target = $region3
    $region8: #{tpu_custom_call.1} parent=1 // loop_exit
      _
    %645 = vsyncpa [#allocation3], 1
    %s646 = scalar_lea.sflag [#allocation3], 1
    %647 = vsyncpa %s646, 1
    %648 = vsyncpa [#allocation4], 1
    %s649 = scalar_lea.sflag [#allocation4], 1
    %650 = vsyncpa %s649, 1

</llo_original>
